<compile_context>
chip_gen: v7x
topology: tpu7x:2x2x1
jax: 0.10.0
libtpu: 0.0.40
codegen_flags: <defaults>
</compile_context>

<pallas_src>
import functools

import jax
import jax.numpy as jnp
from jax import lax
from jax.experimental import pallas as pl
from jax.experimental.pallas import tpu as pltpu

_EPS = 1e-5


def _layer_norm(x, gamma, beta):
    mu = jnp.mean(x, axis=-1, keepdims=True)
    var = jnp.mean((x - mu) ** 2, axis=-1, keepdims=True)
    return (x - mu) * lax.rsqrt(var + _EPS) * gamma + beta


# --------------------------------------------------------------------------------------
# Kernel 1: LN1 + per-head K / V projection for one (batch, seq-tile) block.
# --------------------------------------------------------------------------------------
def _ln_kv_kernel(x_ref, ln1g_ref, ln1b_ref, wk_ref, wv_ref, k_ref, v_ref, *, heads):
    x = x_ref[0]                                         # (TS, D) f32
    xn = _layer_norm(x, ln1g_ref[0], ln1b_ref[0])        # f32 LN statistics
    xn_b = xn.astype(jnp.bfloat16)                       # bf16 feed for the MXU
    for h in range(heads):                               # static unroll; leading-axis writes only
        k_h = jnp.dot(xn_b, wk_ref[h], preferred_element_type=jnp.float32)
        v_h = jnp.dot(xn_b, wv_ref[h], preferred_element_type=jnp.float32)
        k_ref[0, h] = k_h.astype(k_ref.dtype)
        v_ref[0, h] = v_h.astype(v_ref.dtype)


# --------------------------------------------------------------------------------------
# Kernel 2: attention (per-head, K/V resident) + out-proj + residual + LN2 + FFN + residual
# for one (batch, query-tile) block.
# --------------------------------------------------------------------------------------
def _attn_ffn_kernel(x_ref, k_ref, v_ref, ln1g_ref, ln1b_ref, wq_ref, wo_ref, bo_ref,
                     ln2g_ref, ln2b_ref, w1_ref, b1_ref, w2_ref, b2_ref, o_ref, *, heads):
    x = x_ref[0]                                         # (TQ, D) f32
    tq, d = x.shape

    # ---- LayerNorm 1 (query tile only; K/V were produced by the first kernel) ----
    xn = _layer_norm(x, ln1g_ref[0], ln1b_ref[0])
    xn_b = xn.astype(jnp.bfloat16)

    # ---- Multi-head attention (softmax scale already folded into Wq) ----
    acc = jnp.zeros((tq, d), jnp.float32)
    for h in range(heads):                               # static unroll
        q_h = jnp.dot(xn_b, wq_ref[h],
                      preferred_element_type=jnp.float32).astype(jnp.bfloat16)   # (TQ, dh)
        k_h = k_ref[0, h]                                # (N, dh) bf16
        v_h = v_ref[0, h]                                # (N, dh) bf16
        # contract last dims of q and k: no explicit k.T transpose
        dots = lax.dot_general(q_h, k_h, (((1,), (1,)), ((), ())),
                               preferred_element_type=jnp.float32)               # (TQ, N) f32
        dots = dots - jnp.max(dots, axis=-1, keepdims=True)
        p = jnp.exp(dots)
        p = p * pl.reciprocal(jnp.sum(p, axis=-1, keepdims=True), approx=True)
        pv = jnp.dot(p.astype(jnp.bfloat16), v_h,
                     preferred_element_type=jnp.float32).astype(jnp.bfloat16)    # (TQ, dh)
        # concat(heads) @ Wo  ==  sum_h (p_h @ v_h) @ Wo[h]  -> no lane-axis concat/slice
        acc = acc + jnp.dot(pv, wo_ref[h], preferred_element_type=jnp.float32)   # (TQ, D)

    x1 = x + acc + bo_ref[0]                             # residual 1 (f32)

    # ---- LayerNorm 2 + FeedForward (Linear -> exact-erf GELU -> Linear) ----
    x2 = _layer_norm(x1, ln2g_ref[0], ln2b_ref[0])
    h1 = jnp.dot(x2.astype(jnp.bfloat16), w1_ref[...],
                 preferred_element_type=jnp.float32) + b1_ref[0]
    h1 = 0.5 * h1 * (1.0 + lax.erf(h1 * (2.0 ** -0.5)))  # exact GELU (PyTorch nn.GELU default)
    ff = jnp.dot(h1.astype(jnp.bfloat16), w2_ref[...],
                 preferred_element_type=jnp.float32) + b2_ref[0]

    o_ref[0] = (x1 + ff).astype(o_ref.dtype)             # residual 2


# --------------------------------------------------------------------------------------
# Wrapper
# --------------------------------------------------------------------------------------
def _seq_tile(n, target=256):
    """Largest 8-aligned tile <= target that divides n (or the full n)."""
    if n <= target:
        return n
    for t in range(target, 7, -1):
        if n % t == 0 and t % 8 == 0:
            return t
    return n


def _clamp_vmem(nbytes):
    return int(min(max(nbytes, 16 * 1024 * 1024), 64 * 1024 * 1024))


def transformer_block(x, params, heads):
    B, N, D = x.shape
    (ln1g, ln1b, wqkv, wo, bo, ln2g, ln2b, w1, b1, w2, b2) = params
    assert D % heads == 0
    dh = D // heads
    mlp = w1.shape[1]
    scale = dh ** (-0.5)

    # Wrapper-side weight re-layout: per-head, bf16, softmax scale folded into Wq.
    per_head = lambda w: w.reshape(D, heads, dh).transpose(1, 0, 2)        # (heads, D, dh)
    wq_h = (per_head(wqkv[:, :D]) * scale).astype(jnp.bfloat16)
    wk_h = per_head(wqkv[:, D:2 * D]).astype(jnp.bfloat16)
    wv_h = per_head(wqkv[:, 2 * D:]).astype(jnp.bfloat16)
    wo_h = wo.reshape(heads, dh, D).astype(jnp.bfloat16)                   # row block per head
    w1_b = w1.astype(jnp.bfloat16)
    w2_b = w2.astype(jnp.bfloat16)

    TS = _seq_tile(N)     # seq tile for the K/V projection pass
    TQ = _seq_tile(N)     # query tile for the attention/FFN pass

    def full(a):
        nd = a.ndim
        return pl.BlockSpec(a.shape, lambda b, s: (0,) * nd)

    f32, bf16 = 4, 2
    est1 = (2 * TS * D * f32                        # x tile (double-buffered)
            + 2 * 2 * heads * TS * dh * bf16        # K, V output tiles (double-buffered)
            + 2 * 2 * heads * D * dh * bf16         # Wk, Wv (double-buffered)
            + 4 * TS * D * f32)                     # in-kernel transients
    est2 = (2 * 2 * TQ * D * f32                    # x in + out tiles (double-buffered)
            + 2 * 2 * heads * N * dh * bf16         # resident K and V (double-buffered)
            + 2 * (2 * heads * D * dh + 2 * D * mlp) * bf16   # Wq, Wo, W1, W2
            + 4 * TQ * max(N, mlp, D) * f32         # scores / h1 / acc transients
            + 2 * 1024 * 1024)                      # biases, LN params, slack
    vmem1 = _clamp_vmem(int(est1 * 1.5))
    vmem2 = _clamp_vmem(int(est2 * 1.5))

    # ---- Pass 1: LN1 + K/V projection ----
    kv_shape = jax.ShapeDtypeStruct((B, heads, N, dh), jnp.bfloat16)
    k_all, v_all = pl.pallas_call(
        functools.partial(_ln_kv_kernel, heads=heads),
        out_shape=(kv_shape, kv_shape),
        grid_spec=pltpu.PrefetchScalarGridSpec(
            num_scalar_prefetch=0,
            grid=(B, N // TS),
            in_specs=[
                pl.BlockSpec((1, TS, D), lambda b, s: (b, s, 0)),
                full(ln1g), full(ln1b),
                pl.BlockSpec((heads, D, dh), lambda b, s: (0, 0, 0)),
                pl.BlockSpec((heads, D, dh), lambda b, s: (0, 0, 0)),
            ],
            out_specs=(
                pl.BlockSpec((1, heads, TS, dh), lambda b, s: (b, 0, s, 0)),
                pl.BlockSpec((1, heads, TS, dh), lambda b, s: (b, 0, s, 0)),
            ),
        ),
        compiler_params=pltpu.CompilerParams(
            dimension_semantics=("parallel", "parallel"),
            vmem_limit_bytes=vmem1),
    )(x, ln1g, ln1b, wk_h, wv_h)

    # ---- Pass 2: attention + out-proj + residual + LN2 + FFN + residual ----
    out = pl.pallas_call(
        functools.partial(_attn_ffn_kernel, heads=heads),
        out_shape=jax.ShapeDtypeStruct((B, N, D), x.dtype),
        grid_spec=pltpu.PrefetchScalarGridSpec(
            num_scalar_prefetch=0,
            grid=(B, N // TQ),
            in_specs=[
                pl.BlockSpec((1, TQ, D), lambda b, q: (b, q, 0)),             # x query tile
                pl.BlockSpec((1, heads, N, dh), lambda b, q: (b, 0, 0, 0)),   # K (resident per batch)
                pl.BlockSpec((1, heads, N, dh), lambda b, q: (b, 0, 0, 0)),   # V (resident per batch)
                full(ln1g), full(ln1b),
                pl.BlockSpec((heads, D, dh), lambda b, q: (0, 0, 0)),         # Wq (scaled, per-head)
                pl.BlockSpec((heads, dh, D), lambda b, q: (0, 0, 0)),         # Wo (per-head row block)
                full(bo), full(ln2g), full(ln2b),
                full(w1_b), full(b1), full(w2_b), full(b2),
            ],
            out_specs=pl.BlockSpec((1, TQ, D), lambda b, q: (b, q, 0)),
        ),
        compiler_params=pltpu.CompilerParams(
            dimension_semantics=("parallel", "parallel"),
            vmem_limit_bytes=vmem2),
    )(x, k_all, v_all, ln1g, ln1b, wq_h, wo_h, bo, ln2g, ln2b, w1_b, b1, w2_b, b2)
    return out


# --------------------------------------------------------------------------------------
# Plain-JAX reference (f32 throughout) of the same forward pass, for a sanity check.
# --------------------------------------------------------------------------------------
def _reference(x, params, heads):
    (ln1g, ln1b, wqkv, wo, bo, ln2g, ln2b, w1, b1, w2, b2) = params
    B, N, D = x.shape
    dh = D // heads

    def ln(v, g, b):
        mu = jnp.mean(v, axis=-1, keepdims=True)
        var = jnp.mean((v - mu) ** 2, axis=-1, keepdims=True)
        return (v - mu) / jnp.sqrt(var + _EPS) * g + b

    xn = ln(x, ln1g[0], ln1b[0])
    qkv = xn @ wqkv
    q, k, v = jnp.split(qkv, 3, axis=-1)
    r = lambda t: t.reshape(B, N, heads, dh).transpose(0, 2, 1, 3)
    q, k, v = r(q), r(k), r(v)
    dots = jnp.einsum("bhqd,bhkd->bhqk", q, k) * dh ** (-0.5)
    attn = jax.nn.softmax(dots, axis=-1)
    out = jnp.einsum("bhqk,bhkd->bhqd", attn, v).transpose(0, 2, 1, 3).reshape(B, N, D)
    out = out @ wo + bo[0]
    x1 = x + out
    x2 = ln(x1, ln2g[0], ln2b[0])
    h1 = x2 @ w1 + b1[0]
    h1 = 0.5 * h1 * (1.0 + lax.erf(h1 * (2.0 ** -0.5)))
    ff = h1 @ w2 + b2[0]
    return x1 + ff


if __name__ == "__main__":
    B, N, D = 2, 8, 32
    heads = 4
    mlp_dim = 64

    key = jax.random.PRNGKey(0)
    ks = jax.random.split(key, 12)

    x = jax.random.normal(ks[0], (B, N, D), dtype=jnp.float32)

    # Deterministic synthetic parameters (shapes follow the PyTorch module __init__).
    ln1g = 1.0 + 0.1 * jax.random.normal(ks[1], (1, D), jnp.float32)
    ln1b = 0.1 * jax.random.normal(ks[2], (1, D), jnp.float32)
    wqkv = 0.05 * jax.random.normal(ks[3], (D, 3 * D), jnp.float32)   # to_qkv (bias=False)
    wo = 0.05 * jax.random.normal(ks[4], (D, D), jnp.float32)         # to_out Linear weight
    bo = 0.05 * jax.random.normal(ks[5], (1, D), jnp.float32)         # to_out Linear bias
    ln2g = 1.0 + 0.1 * jax.random.normal(ks[6], (1, D), jnp.float32)
    ln2b = 0.1 * jax.random.normal(ks[7], (1, D), jnp.float32)
    w1 = 0.05 * jax.random.normal(ks[8], (D, mlp_dim), jnp.float32)   # ffn first Linear
    b1 = 0.05 * jax.random.normal(ks[9], (1, mlp_dim), jnp.float32)
    w2 = 0.05 * jax.random.normal(ks[10], (mlp_dim, D), jnp.float32)  # ffn second Linear
    b2 = 0.05 * jax.random.normal(ks[11], (1, D), jnp.float32)

    params = (ln1g, ln1b, wqkv, wo, bo, ln2g, ln2b, w1, b1, w2, b2)

    y = transformer_block(x, params, heads)
    y = jax.block_until_ready(y)

    # Tolerance accounts for bf16 MXU inputs (f32 accumulation) vs the f32 reference.
    y_ref = _reference(x, params, heads)
    assert jnp.allclose(y, y_ref, atol=1e-2, rtol=1e-2), "mismatch vs JAX reference"

    print("KERNEL_OK")
</pallas_src>

<mosaic_0001>
module attributes {stable_mosaic.version = 11 : i64} {
  func.func @_ln_kv_kernel(%arg0: i32, %arg1: i32, %arg2: memref<1x8x32xf32, #tpu.memory_space<vmem>>, %arg3: memref<1x32xf32, #tpu.memory_space<vmem>>, %arg4: memref<1x32xf32, #tpu.memory_space<vmem>>, %arg5: memref<4x32x8xbf16, #tpu.memory_space<vmem>>, %arg6: memref<4x32x8xbf16, #tpu.memory_space<vmem>>, %arg7: memref<1x4x8x8xbf16, #tpu.memory_space<vmem>>, %arg8: memref<1x4x8x8xbf16, #tpu.memory_space<vmem>>) attributes {dimension_semantics = [#tpu.dimension_semantics<parallel>, #tpu.dimension_semantics<parallel>], iteration_bounds = array<i64: 2, 1>, scalar_prefetch = 0 : i64, scratch_operands = 0 : i64, tpu.core_type = #tpu.core_type<tc>, window_params = [{transform_indices = @transform_0, window_bounds = array<i64: 1, 8, 32>}, {pipeline_mode = #tpu.pipeline_mode<synchronous>, transform_indices = @transform_1, window_bounds = array<i64: 1, 32>}, {pipeline_mode = #tpu.pipeline_mode<synchronous>, transform_indices = @transform_2, window_bounds = array<i64: 1, 32>}, {pipeline_mode = #tpu.pipeline_mode<synchronous>, transform_indices = @transform_3, window_bounds = array<i64: 4, 32, 8>}, {pipeline_mode = #tpu.pipeline_mode<synchronous>, transform_indices = @transform_4, window_bounds = array<i64: 4, 32, 8>}, {transform_indices = @transform_5, window_bounds = array<i64: 1, 4, 8, 8>}, {transform_indices = @transform_6, window_bounds = array<i64: 1, 4, 8, 8>}]} {
    %c0 = arith.constant 0 : index
    %c0_0 = arith.constant 0 : index
    %c0_1 = arith.constant 0 : index
    %0 = vector.load %arg2[%c0, %c0_0, %c0_1] : memref<1x8x32xf32, #tpu.memory_space<vmem>>, vector<1x8x32xf32>
    %1 = vector.shape_cast %0 : vector<1x8x32xf32> to vector<8x32xf32>
    %c0_2 = arith.constant 0 : index
    %c0_3 = arith.constant 0 : index
    %2 = vector.load %arg3[%c0_2, %c0_3] : memref<1x32xf32, #tpu.memory_space<vmem>>, vector<1x32xf32>
    %3 = vector.shape_cast %2 : vector<1x32xf32> to vector<32xf32>
    %c0_4 = arith.constant 0 : index
    %c0_5 = arith.constant 0 : index
    %4 = vector.load %arg4[%c0_4, %c0_5] : memref<1x32xf32, #tpu.memory_space<vmem>>, vector<1x32xf32>
    %5 = vector.shape_cast %4 : vector<1x32xf32> to vector<32xf32>
    %cst = arith.constant dense<0.000000e+00> : vector<8xf32>
    %6 = vector.multi_reduction <add>, %1, %cst [1] : vector<8x32xf32> to vector<8xf32>
    %7 = vector.shape_cast %6 : vector<8xf32> to vector<8x1xf32>
    %cst_6 = arith.constant 3.200000e+01 : f32
    %8 = vector.broadcast %cst_6 : f32 to vector<8x1xf32>
    %9 = arith.divf %7, %8 : vector<8x1xf32>
    %10 = vector.broadcast %9 : vector<8x1xf32> to vector<8x32xf32>
    %11 = arith.subf %1, %10 : vector<8x32xf32>
    %12 = arith.mulf %11, %11 : vector<8x32xf32>
    %cst_7 = arith.constant dense<0.000000e+00> : vector<8xf32>
    %13 = vector.multi_reduction <add>, %12, %cst_7 [1] : vector<8x32xf32> to vector<8xf32>
    %14 = vector.shape_cast %13 : vector<8xf32> to vector<8x1xf32>
    %cst_8 = arith.constant 3.200000e+01 : f32
    %15 = vector.broadcast %cst_8 : f32 to vector<8x1xf32>
    %16 = arith.divf %14, %15 : vector<8x1xf32>
    %17 = vector.broadcast %9 : vector<8x1xf32> to vector<8x32xf32>
    %18 = arith.subf %1, %17 : vector<8x32xf32>
    %cst_9 = arith.constant 9.99999974E-6 : f32
    %19 = vector.broadcast %cst_9 : f32 to vector<8x1xf32>
    %20 = arith.addf %16, %19 : vector<8x1xf32>
    %21 = math.rsqrt %20 : vector<8x1xf32>
    %22 = vector.broadcast %21 : vector<8x1xf32> to vector<8x32xf32>
    %23 = arith.mulf %18, %22 : vector<8x32xf32>
    %24 = vector.shape_cast %3 : vector<32xf32> to vector<1x32xf32>
    %25 = vector.broadcast %24 : vector<1x32xf32> to vector<8x32xf32>
    %26 = arith.mulf %23, %25 : vector<8x32xf32>
    %27 = vector.shape_cast %5 : vector<32xf32> to vector<1x32xf32>
    %28 = vector.broadcast %27 : vector<1x32xf32> to vector<8x32xf32>
    %29 = arith.addf %26, %28 : vector<8x32xf32>
    %30 = arith.truncf %29 : vector<8x32xf32> to vector<8x32xbf16>
    %c0_10 = arith.constant 0 : index
    %c0_11 = arith.constant 0 : index
    %c0_12 = arith.constant 0 : index
    %31 = vector.load %arg5[%c0_10, %c0_11, %c0_12] : memref<4x32x8xbf16, #tpu.memory_space<vmem>>, vector<1x32x8xbf16>
    %32 = vector.shape_cast %31 : vector<1x32x8xbf16> to vector<32x8xbf16>
    %cst_13 = arith.constant dense<0.000000e+00> : vector<8x8xf32>
    %33 = tpu.matmul %30, %32, %cst_13 {dimension_numbers = #tpu.dot_dimension_numbers<[1], [0], [0], [1], [0, 0, 1, 1], [], []>} : vector<8x32xbf16>, vector<32x8xbf16>, vector<8x8xf32> -> vector<8x8xf32>
    %c0_14 = arith.constant 0 : index
    %c0_15 = arith.constant 0 : index
    %c0_16 = arith.constant 0 : index
    %34 = vector.load %arg6[%c0_14, %c0_15, %c0_16] : memref<4x32x8xbf16, #tpu.memory_space<vmem>>, vector<1x32x8xbf16>
    %35 = vector.shape_cast %34 : vector<1x32x8xbf16> to vector<32x8xbf16>
    %cst_17 = arith.constant dense<0.000000e+00> : vector<8x8xf32>
    %36 = tpu.matmul %30, %35, %cst_17 {dimension_numbers = #tpu.dot_dimension_numbers<[1], [0], [0], [1], [0, 0, 1, 1], [], []>} : vector<8x32xbf16>, vector<32x8xbf16>, vector<8x8xf32> -> vector<8x8xf32>
    %37 = arith.truncf %33 : vector<8x8xf32> to vector<8x8xbf16>
    %c0_18 = arith.constant 0 : index
    %c0_19 = arith.constant 0 : index
    %c0_20 = arith.constant 0 : index
    %c0_21 = arith.constant 0 : index
    %38 = vector.load %arg7[%c0_18, %c0_19, %c0_20, %c0_21] : memref<1x4x8x8xbf16, #tpu.memory_space<vmem>>, vector<1x1x8x8xbf16>
    %39 = vector.shape_cast %38 : vector<1x1x8x8xbf16> to vector<8x8xbf16>
    %40 = vector.shape_cast %37 : vector<8x8xbf16> to vector<1x1x8x8xbf16>
    tpu.vector_store %arg7[%c0_18, %c0_19, %c0_20, %c0_21], %40 {strides = array<i32>} : memref<1x4x8x8xbf16, #tpu.memory_space<vmem>>, vector<1x1x8x8xbf16>,
    %41 = arith.truncf %36 : vector<8x8xf32> to vector<8x8xbf16>
    %c0_22 = arith.constant 0 : index
    %c0_23 = arith.constant 0 : index
    %c0_24 = arith.constant 0 : index
    %c0_25 = arith.constant 0 : index
    %42 = vector.load %arg8[%c0_22, %c0_23, %c0_24, %c0_25] : memref<1x4x8x8xbf16, #tpu.memory_space<vmem>>, vector<1x1x8x8xbf16>
    %43 = vector.shape_cast %42 : vector<1x1x8x8xbf16> to vector<8x8xbf16>
    %44 = vector.shape_cast %41 : vector<8x8xbf16> to vector<1x1x8x8xbf16>
    tpu.vector_store %arg8[%c0_22, %c0_23, %c0_24, %c0_25], %44 {strides = array<i32>} : memref<1x4x8x8xbf16, #tpu.memory_space<vmem>>, vector<1x1x8x8xbf16>,
    %c1 = arith.constant 1 : index
    %c0_26 = arith.constant 0 : index
    %c0_27 = arith.constant 0 : index
    %45 = vector.load %arg5[%c1, %c0_26, %c0_27] : memref<4x32x8xbf16, #tpu.memory_space<vmem>>, vector<1x32x8xbf16>
    %46 = vector.shape_cast %45 : vector<1x32x8xbf16> to vector<32x8xbf16>
    %cst_28 = arith.constant dense<0.000000e+00> : vector<8x8xf32>
    %47 = tpu.matmul %30, %46, %cst_28 {dimension_numbers = #tpu.dot_dimension_numbers<[1], [0], [0], [1], [0, 0, 1, 1], [], []>} : vector<8x32xbf16>, vector<32x8xbf16>, vector<8x8xf32> -> vector<8x8xf32>
    %c1_29 = arith.constant 1 : index
    %c0_30 = arith.constant 0 : index
    %c0_31 = arith.constant 0 : index
    %48 = vector.load %arg6[%c1_29, %c0_30, %c0_31] : memref<4x32x8xbf16, #tpu.memory_space<vmem>>, vector<1x32x8xbf16>
    %49 = vector.shape_cast %48 : vector<1x32x8xbf16> to vector<32x8xbf16>
    %cst_32 = arith.constant dense<0.000000e+00> : vector<8x8xf32>
    %50 = tpu.matmul %30, %49, %cst_32 {dimension_numbers = #tpu.dot_dimension_numbers<[1], [0], [0], [1], [0, 0, 1, 1], [], []>} : vector<8x32xbf16>, vector<32x8xbf16>, vector<8x8xf32> -> vector<8x8xf32>
    %51 = arith.truncf %47 : vector<8x8xf32> to vector<8x8xbf16>
    %c0_33 = arith.constant 0 : index
    %c1_34 = arith.constant 1 : index
    %c0_35 = arith.constant 0 : index
    %c0_36 = arith.constant 0 : index
    %52 = vector.load %arg7[%c0_33, %c1_34, %c0_35, %c0_36] : memref<1x4x8x8xbf16, #tpu.memory_space<vmem>>, vector<1x1x8x8xbf16>
    %53 = vector.shape_cast %52 : vector<1x1x8x8xbf16> to vector<8x8xbf16>
    %54 = vector.shape_cast %51 : vector<8x8xbf16> to vector<1x1x8x8xbf16>
    tpu.vector_store %arg7[%c0_33, %c1_34, %c0_35, %c0_36], %54 {strides = array<i32>} : memref<1x4x8x8xbf16, #tpu.memory_space<vmem>>, vector<1x1x8x8xbf16>,
    %55 = arith.truncf %50 : vector<8x8xf32> to vector<8x8xbf16>
    %c0_37 = arith.constant 0 : index
    %c1_38 = arith.constant 1 : index
    %c0_39 = arith.constant 0 : index
    %c0_40 = arith.constant 0 : index
    %56 = vector.load %arg8[%c0_37, %c1_38, %c0_39, %c0_40] : memref<1x4x8x8xbf16, #tpu.memory_space<vmem>>, vector<1x1x8x8xbf16>
    %57 = vector.shape_cast %56 : vector<1x1x8x8xbf16> to vector<8x8xbf16>
    %58 = vector.shape_cast %55 : vector<8x8xbf16> to vector<1x1x8x8xbf16>
    tpu.vector_store %arg8[%c0_37, %c1_38, %c0_39, %c0_40], %58 {strides = array<i32>} : memref<1x4x8x8xbf16, #tpu.memory_space<vmem>>, vector<1x1x8x8xbf16>,
    %c2 = arith.constant 2 : index
    %c0_41 = arith.constant 0 : index
    %c0_42 = arith.constant 0 : index
    %59 = vector.load %arg5[%c2, %c0_41, %c0_42] : memref<4x32x8xbf16, #tpu.memory_space<vmem>>, vector<1x32x8xbf16>
    %60 = vector.shape_cast %59 : vector<1x32x8xbf16> to vector<32x8xbf16>
    %cst_43 = arith.constant dense<0.000000e+00> : vector<8x8xf32>
    %61 = tpu.matmul %30, %60, %cst_43 {dimension_numbers = #tpu.dot_dimension_numbers<[1], [0], [0], [1], [0, 0, 1, 1], [], []>} : vector<8x32xbf16>, vector<32x8xbf16>, vector<8x8xf32> -> vector<8x8xf32>
    %c2_44 = arith.constant 2 : index
    %c0_45 = arith.constant 0 : index
    %c0_46 = arith.constant 0 : index
    %62 = vector.load %arg6[%c2_44, %c0_45, %c0_46] : memref<4x32x8xbf16, #tpu.memory_space<vmem>>, vector<1x32x8xbf16>
    %63 = vector.shape_cast %62 : vector<1x32x8xbf16> to vector<32x8xbf16>
    %cst_47 = arith.constant dense<0.000000e+00> : vector<8x8xf32>
    %64 = tpu.matmul %30, %63, %cst_47 {dimension_numbers = #tpu.dot_dimension_numbers<[1], [0], [0], [1], [0, 0, 1, 1], [], []>} : vector<8x32xbf16>, vector<32x8xbf16>, vector<8x8xf32> -> vector<8x8xf32>
    %65 = arith.truncf %61 : vector<8x8xf32> to vector<8x8xbf16>
    %c0_48 = arith.constant 0 : index
    %c2_49 = arith.constant 2 : index
    %c0_50 = arith.constant 0 : index
    %c0_51 = arith.constant 0 : index
    %66 = vector.load %arg7[%c0_48, %c2_49, %c0_50, %c0_51] : memref<1x4x8x8xbf16, #tpu.memory_space<vmem>>, vector<1x1x8x8xbf16>
    %67 = vector.shape_cast %66 : vector<1x1x8x8xbf16> to vector<8x8xbf16>
    %68 = vector.shape_cast %65 : vector<8x8xbf16> to vector<1x1x8x8xbf16>
    tpu.vector_store %arg7[%c0_48, %c2_49, %c0_50, %c0_51], %68 {strides = array<i32>} : memref<1x4x8x8xbf16, #tpu.memory_space<vmem>>, vector<1x1x8x8xbf16>,
    %69 = arith.truncf %64 : vector<8x8xf32> to vector<8x8xbf16>
    %c0_52 = arith.constant 0 : index
    %c2_53 = arith.constant 2 : index
    %c0_54 = arith.constant 0 : index
    %c0_55 = arith.constant 0 : index
    %70 = vector.load %arg8[%c0_52, %c2_53, %c0_54, %c0_55] : memref<1x4x8x8xbf16, #tpu.memory_space<vmem>>, vector<1x1x8x8xbf16>
    %71 = vector.shape_cast %70 : vector<1x1x8x8xbf16> to vector<8x8xbf16>
    %72 = vector.shape_cast %69 : vector<8x8xbf16> to vector<1x1x8x8xbf16>
    tpu.vector_store %arg8[%c0_52, %c2_53, %c0_54, %c0_55], %72 {strides = array<i32>} : memref<1x4x8x8xbf16, #tpu.memory_space<vmem>>, vector<1x1x8x8xbf16>,
    %c3 = arith.constant 3 : index
    %c0_56 = arith.constant 0 : index
    %c0_57 = arith.constant 0 : index
    %73 = vector.load %arg5[%c3, %c0_56, %c0_57] : memref<4x32x8xbf16, #tpu.memory_space<vmem>>, vector<1x32x8xbf16>
    %74 = vector.shape_cast %73 : vector<1x32x8xbf16> to vector<32x8xbf16>
    %cst_58 = arith.constant dense<0.000000e+00> : vector<8x8xf32>
    %75 = tpu.matmul %30, %74, %cst_58 {dimension_numbers = #tpu.dot_dimension_numbers<[1], [0], [0], [1], [0, 0, 1, 1], [], []>} : vector<8x32xbf16>, vector<32x8xbf16>, vector<8x8xf32> -> vector<8x8xf32>
    %c3_59 = arith.constant 3 : index
    %c0_60 = arith.constant 0 : index
    %c0_61 = arith.constant 0 : index
    %76 = vector.load %arg6[%c3_59, %c0_60, %c0_61] : memref<4x32x8xbf16, #tpu.memory_space<vmem>>, vector<1x32x8xbf16>
    %77 = vector.shape_cast %76 : vector<1x32x8xbf16> to vector<32x8xbf16>
    %cst_62 = arith.constant dense<0.000000e+00> : vector<8x8xf32>
    %78 = tpu.matmul %30, %77, %cst_62 {dimension_numbers = #tpu.dot_dimension_numbers<[1], [0], [0], [1], [0, 0, 1, 1], [], []>} : vector<8x32xbf16>, vector<32x8xbf16>, vector<8x8xf32> -> vector<8x8xf32>
    %79 = arith.truncf %75 : vector<8x8xf32> to vector<8x8xbf16>
    %c0_63 = arith.constant 0 : index
    %c3_64 = arith.constant 3 : index
    %c0_65 = arith.constant 0 : index
    %c0_66 = arith.constant 0 : index
    %80 = vector.load %arg7[%c0_63, %c3_64, %c0_65, %c0_66] : memref<1x4x8x8xbf16, #tpu.memory_space<vmem>>, vector<1x1x8x8xbf16>
    %81 = vector.shape_cast %80 : vector<1x1x8x8xbf16> to vector<8x8xbf16>
    %82 = vector.shape_cast %79 : vector<8x8xbf16> to vector<1x1x8x8xbf16>
    tpu.vector_store %arg7[%c0_63, %c3_64, %c0_65, %c0_66], %82 {strides = array<i32>} : memref<1x4x8x8xbf16, #tpu.memory_space<vmem>>, vector<1x1x8x8xbf16>,
    %83 = arith.truncf %78 : vector<8x8xf32> to vector<8x8xbf16>
    %c0_67 = arith.constant 0 : index
    %c3_68 = arith.constant 3 : index
    %c0_69 = arith.constant 0 : index
    %c0_70 = arith.constant 0 : index
    %84 = vector.load %arg8[%c0_67, %c3_68, %c0_69, %c0_70] : memref<1x4x8x8xbf16, #tpu.memory_space<vmem>>, vector<1x1x8x8xbf16>
    %85 = vector.shape_cast %84 : vector<1x1x8x8xbf16> to vector<8x8xbf16>
    %86 = vector.shape_cast %83 : vector<8x8xbf16> to vector<1x1x8x8xbf16>
    tpu.vector_store %arg8[%c0_67, %c3_68, %c0_69, %c0_70], %86 {strides = array<i32>} : memref<1x4x8x8xbf16, #tpu.memory_space<vmem>>, vector<1x1x8x8xbf16>,
    return
  }
  func.func @transform_0(%arg0: i32, %arg1: i32) -> (i32, i32, i32) {
    %c0_i32 = arith.constant 0 : i32
    %c0_i32_0 = arith.constant 0 : i32
    return %arg0, %arg1, %c0_i32 : i32, i32, i32
  }
  func.func @transform_1(%arg0: i32, %arg1: i32) -> (i32, i32) {
    %c0_i32 = arith.constant 0 : i32
    %c0_i32_0 = arith.constant 0 : i32
    %c0_i32_1 = arith.constant 0 : i32
    return %c0_i32, %c0_i32_0 : i32, i32
  }
  func.func @transform_2(%arg0: i32, %arg1: i32) -> (i32, i32) {
    %c0_i32 = arith.constant 0 : i32
    %c0_i32_0 = arith.constant 0 : i32
    %c0_i32_1 = arith.constant 0 : i32
    return %c0_i32, %c0_i32_0 : i32, i32
  }
  func.func @transform_3(%arg0: i32, %arg1: i32) -> (i32, i32, i32) {
    %c0_i32 = arith.constant 0 : i32
    %c0_i32_0 = arith.constant 0 : i32
    %c0_i32_1 = arith.constant 0 : i32
    %c0_i32_2 = arith.constant 0 : i32
    return %c0_i32, %c0_i32_0, %c0_i32_1 : i32, i32, i32
  }
  func.func @transform_4(%arg0: i32, %arg1: i32) -> (i32, i32, i32) {
    %c0_i32 = arith.constant 0 : i32
    %c0_i32_0 = arith.constant 0 : i32
    %c0_i32_1 = arith.constant 0 : i32
    %c0_i32_2 = arith.constant 0 : i32
    return %c0_i32, %c0_i32_0, %c0_i32_1 : i32, i32, i32
  }
  func.func @transform_5(%arg0: i32, %arg1: i32) -> (i32, i32, i32, i32) {
    %c0_i32 = arith.constant 0 : i32
    %c0_i32_0 = arith.constant 0 : i32
    %c0_i32_1 = arith.constant 0 : i32
    return %arg0, %c0_i32, %arg1, %c0_i32_0 : i32, i32, i32, i32
  }
  func.func @transform_6(%arg0: i32, %arg1: i32) -> (i32, i32, i32, i32) {
    %c0_i32 = arith.constant 0 : i32
    %c0_i32_0 = arith.constant 0 : i32
    %c0_i32_1 = arith.constant 0 : i32
    return %arg0, %c0_i32, %arg1, %c0_i32_0 : i32, i32, i32, i32
  }
}

</mosaic_0001>

<llo_original>
// kernel: tpu_custom_call.1
$region0: #{tpu_custom_call.1}
  #allocation0 [shape = 'u32[]', space=smem, size = 0x4, offset = 0x4, fixed_abs, tag = 'smem constant byte address 0x4 - core index']
  #allocation1 [shape = 'u32[144,128]{1,0:T(1,128)}', space=vmem, size = 0x12000, scoped, tag = 'internal scratch']
  %s0 = inlined_call_operand.vmem [shape: f32[2,8,32], index: 0, kind: input, shape index: {}]
  %s1 = inlined_call_operand.vmem [shape: f32[1,32], index: 1, kind: input, shape index: {}]
  %s2 = inlined_call_operand.vmem [shape: f32[1,32], index: 2, kind: input, shape index: {}]
  %s3 = inlined_call_operand.vmem [shape: bf16[4,32,8], index: 3, kind: input, shape index: {}]
  %s4 = inlined_call_operand.vmem [shape: bf16[4,32,8], index: 4, kind: input, shape index: {}]
  %s5 = inlined_call_operand.hbm [shape: bf16[2,4,8,8], index: 5, kind: output, shape index: {0}]
  %s6 = inlined_call_operand.hbm [shape: bf16[2,4,8,8], index: 6, kind: output, shape index: {1}]
  %7 = xla_tuple %s5, %s6
  %s8 = sld [smem:[#allocation0]]
  $region61: #{tpu_custom_call.1} parent=0
    _
  %s10 = ssub.s32 1, %s8
  %s11 = scalar_select 0, %s10, %s8
  $region1: #{tpu_custom_call.1} parent=0
    #allocation2 [shape = 'u8[16384]{0}', space=vmem, size = 0x4000, scoped, tag = 'output window, operand 0']
    #allocation3 [shape = 's32[2]{0}', space=sflag, size = 0x8, scoped, tag = 'scoped memory for tpu_custom_call.1']
    #allocation4 [shape = 'u8[16384]{0}', space=vmem, size = 0x4000, scoped, tag = 'output window, operand 1']
    #allocation5 [shape = 's32[2]{0}', space=sflag, size = 0x8, scoped, tag = 'scoped memory for tpu_custom_call.1']
    %12 = vsyncpa [#allocation3], 0
    %s13 = scalar_lea.sflag [#allocation3], 1
    %14 = vsyncpa %s13, 0
    %15 = vsyncpa [#allocation5], 0
    %s16 = scalar_lea.sflag [#allocation5], 1
    %17 = vsyncpa %s16, 0
    loop: start=0, step=1, limit=4
    $region2: #{tpu_custom_call.1} parent=1 // loop_pre_header
      _
    $region3: #{tpu_custom_call.1} parent=1 // loop_header
      %s19 = sphi 0, %s23
      %p20 = scmp.ge.s32.totalorder %s19, 4
      %s26 = sphi 0, %s38
      %s27 = sphi 0, %s34
      %s28 = sphi 0, %s26
      %s29 = sphi 0, %s27
      %s30 = sphi 0, %s28
      %s31 = sphi 0, %s29
      %s43 = sphi 0, %s45
      %s46 = sphi 0, %s43
      %s47 = sphi 0, %s46
      %s63 = sphi 0, %s47
      %s67 = sphi 0, %s67
      %s69 = sphi 0, %s67
      %s70 = sphi 0, %s69
      %s84 = sphi 0, %s70
      %s88 = sphi 0, %s88
      %s90 = sphi 0, %s88
      %s91 = sphi 0, %s90
      %s105 = sphi 0, %s91
      %s109 = sphi 0, %s109
      %s111 = sphi 0, %s109
      %s112 = sphi 0, %s111
      %s126 = sphi 0, %s112
      %s130 = sphi 0, %s130
      %s132 = sphi 0, %s130
      %s133 = sphi 0, %s132
      %s147 = sphi 0, %s133
      %s155 = sphi 0, %s157
      %s158 = sphi 0, %s155
      %s159 = sphi 0, %s158
      %s175 = sphi 0, %s159
      %s183 = sphi 0, %s185
      %s186 = sphi 0, %s183
      %s187 = sphi 0, %s186
      %s203 = sphi 0, %s187
    $region4: #{tpu_custom_call.1} parent=1 // loop_header_branch
      %22 = sbr.rel (%p20) target = $region8
    $region5: #{tpu_custom_call.1} parent=1 // loop_body
      %s24 = ssub.s32 %s19, 1
      %s25 = ssub.s32 %s19, 2
      %s32 = sadd.s32 1, %s27
      %p33 = scmp.ge.s32.totalorder %s32, 1
      %s34 = scalar_select %p33, 0, %s32
      %s35 = sadd.s32 1, %s26
      %s36 = scalar_select %p33, %s35, %s26
      %p37 = scmp.ge.s32.totalorder %s36, 2
      %s38 = scalar_select %p37, 0, %s36
      %s39 = ssub.s32 %s26, %s38
      %s40 = ssub.s32 %s27, %s34
      %s41 = sor.u32 %s39, %s40
      %p42 = scmp.eq.s32.totalorder %s41, 0
      %s44 = sadd.s32 %s43, 1
      %s45 = scalar_select %p42, %s43, %s44
      %p48 = pneg %p42
      %p49 = scmp.eq.s32.totalorder %s19, 1
      %p50 = por %p48, %p49
      %p51 = scmp.ne.s32.totalorder %s43, %s46
      %p52 = scmp.eq.s32.totalorder %s19, 0
      %p53 = por %p51, %p52
      %p54 = scmp.ne.s32.totalorder %s43, %s46
      %p55 = scmp.eq.s32.totalorder %s24, 1
      %p56 = por %p54, %p55
      %p57 = scmp.ne.s32.totalorder %s46, %s47
      %p58 = scmp.eq.s32.totalorder %s24, 0
      %p59 = por %p57, %p58
      %p60 = scmp.ne.s32.totalorder %s46, %s47
      %p61 = scmp.eq.s32.totalorder %s25, 1
      %p62 = por %p60, %p61
      %p64 = scmp.ne.s32.totalorder %s47, %s63
      %p65 = scmp.eq.s32.totalorder %s25, 0
      %p66 = por %p64, %p65
      %s68 = sadd.s32 %s67, 1
      %p71 = scmp.eq.s32.totalorder %s19, 1
      %p72 = scmp.ne.s32.totalorder %s67, %s69
      %p73 = scmp.eq.s32.totalorder %s19, 0
      %p74 = por %p72, %p73
      %p75 = scmp.ne.s32.totalorder %s67, %s69
      %p76 = scmp.eq.s32.totalorder %s24, 1
      %p77 = por %p75, %p76
      %p78 = scmp.ne.s32.totalorder %s69, %s70
      %p79 = scmp.eq.s32.totalorder %s24, 0
      %p80 = por %p78, %p79
      %p81 = scmp.ne.s32.totalorder %s69, %s70
      %p82 = scmp.eq.s32.totalorder %s25, 1
      %p83 = por %p81, %p82
      %p85 = scmp.ne.s32.totalorder %s70, %s84
      %p86 = scmp.eq.s32.totalorder %s25, 0
      %p87 = por %p85, %p86
      %s89 = sadd.s32 %s88, 1
      %p92 = scmp.eq.s32.totalorder %s19, 1
      %p93 = scmp.ne.s32.totalorder %s88, %s90
      %p94 = scmp.eq.s32.totalorder %s19, 0
      %p95 = por %p93, %p94
      %p96 = scmp.ne.s32.totalorder %s88, %s90
      %p97 = scmp.eq.s32.totalorder %s24, 1
      %p98 = por %p96, %p97
      %p99 = scmp.ne.s32.totalorder %s90, %s91
      %p100 = scmp.eq.s32.totalorder %s24, 0
      %p101 = por %p99, %p100
      %p102 = scmp.ne.s32.totalorder %s90, %s91
      %p103 = scmp.eq.s32.totalorder %s25, 1
      %p104 = por %p102, %p103
      %p106 = scmp.ne.s32.totalorder %s91, %s105
      %p107 = scmp.eq.s32.totalorder %s25, 0
      %p108 = por %p106, %p107
      %s110 = sadd.s32 %s109, 1
      %p113 = scmp.eq.s32.totalorder %s19, 1
      %p114 = scmp.ne.s32.totalorder %s109, %s111
      %p115 = scmp.eq.s32.totalorder %s19, 0
      %p116 = por %p114, %p115
      %p117 = scmp.ne.s32.totalorder %s109, %s111
      %p118 = scmp.eq.s32.totalorder %s24, 1
      %p119 = por %p117, %p118
      %p120 = scmp.ne.s32.totalorder %s111, %s112
      %p121 = scmp.eq.s32.totalorder %s24, 0
      %p122 = por %p120, %p121
      %p123 = scmp.ne.s32.totalorder %s111, %s112
      %p124 = scmp.eq.s32.totalorder %s25, 1
      %p125 = por %p123, %p124
      %p127 = scmp.ne.s32.totalorder %s112, %s126
      %p128 = scmp.eq.s32.totalorder %s25, 0
      %p129 = por %p127, %p128
      %s131 = sadd.s32 %s130, 1
      %p134 = scmp.eq.s32.totalorder %s19, 1
      %p135 = scmp.ne.s32.totalorder %s130, %s132
      %p136 = scmp.eq.s32.totalorder %s19, 0
      %p137 = por %p135, %p136
      %p138 = scmp.ne.s32.totalorder %s130, %s132
      %p139 = scmp.eq.s32.totalorder %s24, 1
      %p140 = por %p138, %p139
      %p141 = scmp.ne.s32.totalorder %s132, %s133
      %p142 = scmp.eq.s32.totalorder %s24, 0
      %p143 = por %p141, %p142
      %p144 = scmp.ne.s32.totalorder %s132, %s133
      %p145 = scmp.eq.s32.totalorder %s25, 1
      %p146 = por %p144, %p145
      %p148 = scmp.ne.s32.totalorder %s133, %s147
      %p149 = scmp.eq.s32.totalorder %s25, 0
      %p150 = por %p148, %p149
      %s151 = ssub.s32 %s26, %s38
      %s152 = ssub.s32 %s27, %s34
      %s153 = sor.u32 %s151, %s152
      %p154 = scmp.eq.s32.totalorder %s153, 0
      %s156 = sadd.s32 %s155, 1
      %s157 = scalar_select %p154, %s155, %s156
      %p160 = pneg %p154
      %p161 = scmp.eq.s32.totalorder %s19, 1
      %p162 = por %p160, %p161
      %p163 = scmp.ne.s32.totalorder %s155, %s158
      %p164 = scmp.eq.s32.totalorder %s19, 0
      %p165 = por %p163, %p164
      %p166 = scmp.ne.s32.totalorder %s155, %s158
      %p167 = scmp.eq.s32.totalorder %s24, 1
      %p168 = por %p166, %p167
      %p169 = scmp.ne.s32.totalorder %s158, %s159
      %p170 = scmp.eq.s32.totalorder %s24, 0
      %p171 = por %p169, %p170
      %p172 = scmp.ne.s32.totalorder %s158, %s159
      %p173 = scmp.eq.s32.totalorder %s25, 1
      %p174 = por %p172, %p173
      %p176 = scmp.ne.s32.totalorder %s159, %s175
      %p177 = scmp.eq.s32.totalorder %s25, 0
      %p178 = por %p176, %p177
      %s179 = ssub.s32 %s26, %s38
      %s180 = ssub.s32 %s27, %s34
      %s181 = sor.u32 %s179, %s180
      %p182 = scmp.eq.s32.totalorder %s181, 0
      %s184 = sadd.s32 %s183, 1
      %s185 = scalar_select %p182, %s183, %s184
      %p188 = pneg %p182
      %p189 = scmp.eq.s32.totalorder %s19, 1
      %p190 = por %p188, %p189
      %p191 = scmp.ne.s32.totalorder %s183, %s186
      %p192 = scmp.eq.s32.totalorder %s19, 0
      %p193 = por %p191, %p192
      %p194 = scmp.ne.s32.totalorder %s183, %s186
      %p195 = scmp.eq.s32.totalorder %s24, 1
      %p196 = por %p194, %p195
      %p197 = scmp.ne.s32.totalorder %s186, %s187
      %p198 = scmp.eq.s32.totalorder %s24, 0
      %p199 = por %p197, %p198
      %p200 = scmp.ne.s32.totalorder %s186, %s187
      %p201 = scmp.eq.s32.totalorder %s25, 1
      %p202 = por %p200, %p201
      %p204 = scmp.ne.s32.totalorder %s187, %s203
      %p205 = scmp.eq.s32.totalorder %s25, 0
      %p206 = por %p204, %p205
      %p207 = scmp.le.s32.totalorder 1, %s19
      %p208 = scmp.lt.s32.totalorder %s19, 3
      %p209 = pnand %p207, %p208
      %p210 = pneg %p209
      // Predicated region
      $region9: #{tpu_custom_call.1} parent=5 // pred_check
        _
      $region10: #{tpu_custom_call.1} parent=5 // pred_check_branch
        %212 = sbr.rel (%p209) target = $region12
      $region11: #{tpu_custom_call.1} parent=5 // pred_region
        %s213 = ssub.s32 %s19, 1
        // Predicated region
        $region13: #{tpu_custom_call.1} parent=11 // pred_check
          %p214 = pneg %p80
        $region14: #{tpu_custom_call.1} parent=11 // pred_check_branch
          %216 = sbr.rel (%p214) target = $region16
        $region15: #{tpu_custom_call.1} parent=11 // pred_region
          _
        $region16: #{tpu_custom_call.1} parent=11 // pred_fallthru
          _
        // Predicated region
        $region17: #{tpu_custom_call.1} parent=11 // pred_check
          %p217 = pneg %p101
        $region18: #{tpu_custom_call.1} parent=11 // pred_check_branch
          %219 = sbr.rel (%p217) target = $region20
        $region19: #{tpu_custom_call.1} parent=11 // pred_region
          _
        $region20: #{tpu_custom_call.1} parent=11 // pred_fallthru
          _
        // Predicated region
        $region21: #{tpu_custom_call.1} parent=11 // pred_check
          %p220 = pneg %p122
        $region22: #{tpu_custom_call.1} parent=11 // pred_check_branch
          %222 = sbr.rel (%p220) target = $region24
        $region23: #{tpu_custom_call.1} parent=11 // pred_region
          _
        $region24: #{tpu_custom_call.1} parent=11 // pred_fallthru
          _
        // Predicated region
        $region25: #{tpu_custom_call.1} parent=11 // pred_check
          %p223 = pneg %p143
        $region26: #{tpu_custom_call.1} parent=11 // pred_check_branch
          %225 = sbr.rel (%p223) target = $region28
        $region27: #{tpu_custom_call.1} parent=11 // pred_region
          _
        $region28: #{tpu_custom_call.1} parent=11 // pred_fallthru
          _
      $region12: #{tpu_custom_call.1} parent=5 // pred_fallthru
        _
      %p226 = scmp.lt.s32.totalorder %s19, 2
      // Predicated region
      $region29: #{tpu_custom_call.1} parent=5 // pred_check
        %p227 = pneg %p226
      $region30: #{tpu_custom_call.1} parent=5 // pred_check_branch
        %229 = sbr.rel (%p227) target = $region32
      $region31: #{tpu_custom_call.1} parent=5 // pred_region
        // Predicated region
        $region33: #{tpu_custom_call.1} parent=31 // pred_check
          %p230 = pneg %p53
        $region34: #{tpu_custom_call.1} parent=31 // pred_check_branch
          %232 = sbr.rel (%p230) target = $region36
        $region35: #{tpu_custom_call.1} parent=31 // pred_region
          %p233 = scmp.lt.s32.totalorder %s26, 1
          %s234 = scalar_select %p233, %s26, 1
          %p235 = scmp.lt.s32.totalorder %s27, 0
          %s236 = scalar_select %p235, %s27, 0
          %s237 = sadd.s32 %s236, %s234
          %s238 = smul.addr %s237, 8
          %s239 = scalar_lea.vmem %s0, %s238
        $region36: #{tpu_custom_call.1} parent=31 // pred_fallthru
          _
      $region32: #{tpu_custom_call.1} parent=5 // pred_fallthru
        _
      %p240 = scmp.le.s32.totalorder 1, %s19
      %p241 = scmp.lt.s32.totalorder %s19, 3
      %p242 = pnand %p240, %p241
      %p243 = pneg %p242
      // Predicated region
      $region37: #{tpu_custom_call.1} parent=5 // pred_check
        _
      $region38: #{tpu_custom_call.1} parent=5 // pred_check_branch
        %245 = sbr.rel (%p242) target = $region40
      $region39: #{tpu_custom_call.1} parent=5 // pred_region
        %s246 = ssub.s32 %s19, 1
        %p247 = scmp.lt.s32.totalorder %s28, 1
        %s248 = scalar_select %p247, %s28, 1
        %p249 = scmp.lt.s32.totalorder %s29, 0
        %s250 = scalar_select %p249, %s29, 0
        %s251 = sadd.s32 %s250, %s248
        %s252 = smul.addr %s251, 8
        %s253 = scalar_lea.vmem %s0, %s252
        %p254 = pneg %p59
        %p255 = pneg %p56
        %p256 = pneg %p80
        %p257 = pneg %p77
        %p258 = pneg %p101
        %p259 = pneg %p98
        %p260 = pneg %p122
        %p261 = pneg %p119
        %p262 = pneg %p143
        %p263 = pneg %p140
        %p264 = pneg %p171
        %p265 = pneg %p168
        %s266 = sand.u32 %s158, 1
        %s267 = scalar_lea.sflag [#allocation3], %s266
        %s268 = sand.u32 %s158, 1
        %s269 = smul.addr %s268, 16
        %s270 = scalar_lea.vmem [#allocation2], %s269
        %p271 = pneg %p199
        %p272 = pneg %p196
        %s273 = sand.u32 %s186, 1
        %s274 = scalar_lea.sflag [#allocation5], %s273
        %s275 = sand.u32 %s186, 1
        %s276 = smul.addr %s275, 16
        %s277 = scalar_lea.vmem [#allocation4], %s276
        %p278 = scmp.lt.s32.totalorder %s28, 1
        %s279 = scalar_select %p278, %s28, 1
        %p280 = scmp.lt.s32.totalorder %s29, 0
        %s281 = scalar_select %p280, %s29, 0
        %s282 = sadd.s32 %s281, %s279
        %s283 = smul.addr %s282, 8
        %s284 = scalar_lea.vmem %s0, %s283
        %v286 = vld [vmem:[%s284] sm:$0xff]
        %v287 = vld [vmem:[%s1] sm:$0x1]
        %v288 = vld [vmem:[%s2] sm:$0x1]
        %vm289 = vcmask 261120
        %v290 = vsel %vm289, %v286, 0.0
        %291 = vadd.xlane.f32.xlu0 %v290
        %v292 = vpop.xlane.xlu0 %291
        %v293 = vrcp.pop 32.0
        %v294 = vmul.f32 %v292, %v293
        %v295 = vsub.f32 %v286, %v294
        %v296 = vmul.f32 %v295, %v295
        %v297 = vsel %vm289, %v296, 0.0
        %298 = vadd.xlane.f32.xlu0 %v297
        %v299 = vpop.xlane.xlu0 %298
        %v300 = vmul.f32 %v299, %v293
        %v301 = vadd.f32 %v300, 1e-05
        %v302 = vrsqrt.pop %v301
        %v303 = vmul.f32 %v295, %v302
        %v305 = vlaneseq
        %v306 = vshrl.u32 %v305, 7
        %v307 = vsub.s32 0, %v306
        %v308 = vrot.slane %v287, %v307
        %v310 = vmul.f32 %v303, %v308
        %v312 = vlaneseq
        %v313 = vshrl.u32 %v312, 7
        %v314 = vsub.s32 0, %v313
        %v315 = vrot.slane %v288, %v314
        %v317 = vadd.f32 %v310, %v315
        %v318 = vpack.c.bf16 %v317, %v317
        %v319 = vld [vmem:[%s3] sm:$0xf]
        %v320 = vld [vmem:[%s3 + $0x4] sm:$0xf]
        %v321 = vld [vmem:[%s3 + $0x8] sm:$0xf]
        %v322 = vld [vmem:[%s3 + $0xc] sm:$0xf]
        %v327 = vunpack.c.l.b16 %v319
        %v328 = vunpack.c.l.b16 %v320
        %v329 = vunpack.c.l.b16 %v321
        %v330 = vunpack.c.l.b16 %v322
        %v331 = vpack.c.b16 %v328, %v327
        %v332 = vpack.c.b16 %v330, %v329
        %v336 = vsel %vm289, %v318, 0
        %338 = vmatprep.subr.bf16.mxu0 0
        %339 = vmatpush1.bf16.msra.mxu0 %v331
        %340 = vmatprep.subr.bf16.mxu0 0
        %341 = vmatpush1.bf16.msra.mxu0 %v332
        %342 = vmatprep.subr.bf16.mxu0 0
        %343 = vmatpush1.bf16.msra.mxu0 0
        %344 = vmatprep.subr.bf16.mxu0 0
        %345 = vmatpush1.bf16.msra.mxu0 0
        %346 = vmatprep.subr.bf16.mxu0 0
        %347 = vmatpush1.bf16.msra.mxu0 0
        %348 = vmatprep.subr.bf16.mxu0 0
        %349 = vmatpush1.bf16.msra.mxu0 0
        %350 = vmatprep.subr.bf16.mxu0 0
        %351 = vmatpush1.bf16.msra.mxu0 0
        %352 = vmatprep.subr.bf16.mxu0 0
        %353 = vmatpush1.bf16.msra.mxu0 0
        %354 = vmatprep.subr.bf16.mxu0 0
        %355 = vmatpush1.bf16.msra.mxu0 0
        %356 = vmatprep.subr.bf16.mxu0 0
        %357 = vmatpush1.bf16.msra.mxu0 0
        %358 = vmatprep.subr.bf16.mxu0 0
        %359 = vmatpush1.bf16.msra.mxu0 0
        %360 = vmatprep.subr.bf16.mxu0 0
        %361 = vmatpush1.bf16.msra.mxu0 0
        %362 = vmatprep.subr.bf16.mxu0 0
        %363 = vmatpush1.bf16.msra.mxu0 0
        %364 = vmatprep.subr.bf16.mxu0 0
        %365 = vmatpush1.bf16.msra.mxu0 0
        %366 = vmatprep.subr.bf16.mxu0 0
        %367 = vmatpush1.bf16.msra.mxu0 0
        %368 = vmatprep.subr.bf16.mxu0 0
        %369 = vmatpush1.bf16.msra.mxu0 0
        %370 = vmatprep.mubr.bf16.mxu0 0
        %371 = vmatmul.mubr.bf16.gmra.mrb[0].mxu0 %v336
        %v372 = vpop.f32.mrb[0].mxu0
        %v373 = vadd.f32 0.0, %v372
        %v374 = vpop.f32.mrb[0].mxu0
        %v375 = vpop.f32.mrb[0].mxu0
        %v376 = vpop.f32.mrb[0].mxu0
        %377 = vdwg.mxu0
        %v378 = vld [vmem:[%s4] sm:$0xf]
        %v379 = vld [vmem:[%s4 + $0x4] sm:$0xf]
        %v380 = vld [vmem:[%s4 + $0x8] sm:$0xf]
        %v381 = vld [vmem:[%s4 + $0xc] sm:$0xf]
        %v386 = vunpack.c.l.b16 %v378
        %v387 = vunpack.c.l.b16 %v379
        %v388 = vunpack.c.l.b16 %v380
        %v389 = vunpack.c.l.b16 %v381
        %v390 = vpack.c.b16 %v387, %v386
        %v391 = vpack.c.b16 %v389, %v388
        %394 = vmatprep.subr.bf16.mxu0 0
        %395 = vmatpush1.bf16.msra.mxu0 %v390
        %396 = vmatprep.subr.bf16.mxu0 0
        %397 = vmatpush1.bf16.msra.mxu0 %v391
        %398 = vmatprep.subr.bf16.mxu0 0
        %399 = vmatpush1.bf16.msra.mxu0 0
        %400 = vmatprep.subr.bf16.mxu0 0
        %401 = vmatpush1.bf16.msra.mxu0 0
        %402 = vmatprep.subr.bf16.mxu0 0
        %403 = vmatpush1.bf16.msra.mxu0 0
        %404 = vmatprep.subr.bf16.mxu0 0
        %405 = vmatpush1.bf16.msra.mxu0 0
        %406 = vmatprep.subr.bf16.mxu0 0
        %407 = vmatpush1.bf16.msra.mxu0 0
        %408 = vmatprep.subr.bf16.mxu0 0
        %409 = vmatpush1.bf16.msra.mxu0 0
        %410 = vmatprep.subr.bf16.mxu0 0
        %411 = vmatpush1.bf16.msra.mxu0 0
        %412 = vmatprep.subr.bf16.mxu0 0
        %413 = vmatpush1.bf16.msra.mxu0 0
        %414 = vmatprep.subr.bf16.mxu0 0
        %415 = vmatpush1.bf16.msra.mxu0 0
        %416 = vmatprep.subr.bf16.mxu0 0
        %417 = vmatpush1.bf16.msra.mxu0 0
        %418 = vmatprep.subr.bf16.mxu0 0
        %419 = vmatpush1.bf16.msra.mxu0 0
        %420 = vmatprep.subr.bf16.mxu0 0
        %421 = vmatpush1.bf16.msra.mxu0 0
        %422 = vmatprep.subr.bf16.mxu0 0
        %423 = vmatpush1.bf16.msra.mxu0 0
        %424 = vmatprep.subr.bf16.mxu0 0
        %425 = vmatpush1.bf16.msra.mxu0 0
        %426 = vmatprep.mubr.bf16.mxu0 0
        %427 = vmatmul.mubr.bf16.gmra.mrb[0].mxu0 %v336
        %v428 = vpop.f32.mrb[0].mxu0
        %v429 = vadd.f32 0.0, %v428
        %v430 = vpop.f32.mrb[0].mxu0
        %v431 = vpop.f32.mrb[0].mxu0
        %v432 = vpop.f32.mrb[0].mxu0
        %433 = vdwg.mxu0
        %v434 = vpack.c.bf16 %v373, %v373
        %vm435 = vcmask 60416
        %436 = vst.msk [vmem:[%s270] sm:$0xf] %vm435, %v434
        %v437 = vpack.c.bf16 %v429, %v429
        %438 = vst.msk [vmem:[%s277] sm:$0xf] %vm435, %v437
        %s439 = scalar_lea.vmem %s3, 16
        %v440 = vld [vmem:[%s439] sm:$0xf]
        %v441 = vld [vmem:[%s439 + $0x4] sm:$0xf]
        %v442 = vld [vmem:[%s439 + $0x8] sm:$0xf]
        %v443 = vld [vmem:[%s439 + $0xc] sm:$0xf]
        %v448 = vunpack.c.l.b16 %v440
        %v449 = vunpack.c.l.b16 %v441
        %v450 = vunpack.c.l.b16 %v442
        %v451 = vunpack.c.l.b16 %v443
        %v452 = vpack.c.b16 %v449, %v448
        %v453 = vpack.c.b16 %v451, %v450
        %456 = vmatprep.subr.bf16.mxu0 0
        %457 = vmatpush1.bf16.msra.mxu0 %v452
        %458 = vmatprep.subr.bf16.mxu0 0
        %459 = vmatpush1.bf16.msra.mxu0 %v453
        %460 = vmatprep.subr.bf16.mxu0 0
        %461 = vmatpush1.bf16.msra.mxu0 0
        %462 = vmatprep.subr.bf16.mxu0 0
        %463 = vmatpush1.bf16.msra.mxu0 0
        %464 = vmatprep.subr.bf16.mxu0 0
        %465 = vmatpush1.bf16.msra.mxu0 0
        %466 = vmatprep.subr.bf16.mxu0 0
        %467 = vmatpush1.bf16.msra.mxu0 0
        %468 = vmatprep.subr.bf16.mxu0 0
        %469 = vmatpush1.bf16.msra.mxu0 0
        %470 = vmatprep.subr.bf16.mxu0 0
        %471 = vmatpush1.bf16.msra.mxu0 0
        %472 = vmatprep.subr.bf16.mxu0 0
        %473 = vmatpush1.bf16.msra.mxu0 0
        %474 = vmatprep.subr.bf16.mxu0 0
        %475 = vmatpush1.bf16.msra.mxu0 0
        %476 = vmatprep.subr.bf16.mxu0 0
        %477 = vmatpush1.bf16.msra.mxu0 0
        %478 = vmatprep.subr.bf16.mxu0 0
        %479 = vmatpush1.bf16.msra.mxu0 0
        %480 = vmatprep.subr.bf16.mxu0 0
        %481 = vmatpush1.bf16.msra.mxu0 0
        %482 = vmatprep.subr.bf16.mxu0 0
        %483 = vmatpush1.bf16.msra.mxu0 0
        %484 = vmatprep.subr.bf16.mxu0 0
        %485 = vmatpush1.bf16.msra.mxu0 0
        %486 = vmatprep.subr.bf16.mxu0 0
        %487 = vmatpush1.bf16.msra.mxu0 0
        %488 = vmatprep.mubr.bf16.mxu0 0
        %489 = vmatmul.mubr.bf16.gmra.mrb[0].mxu0 %v336
        %v490 = vpop.f32.mrb[0].mxu0
        %v491 = vadd.f32 0.0, %v490
        %v492 = vpop.f32.mrb[0].mxu0
        %v493 = vpop.f32.mrb[0].mxu0
        %v494 = vpop.f32.mrb[0].mxu0
        %495 = vdwg.mxu0
        %s496 = scalar_lea.vmem %s4, 16
        %v497 = vld [vmem:[%s496] sm:$0xf]
        %v498 = vld [vmem:[%s496 + $0x4] sm:$0xf]
        %v499 = vld [vmem:[%s496 + $0x8] sm:$0xf]
        %v500 = vld [vmem:[%s496 + $0xc] sm:$0xf]
        %v505 = vunpack.c.l.b16 %v497
        %v506 = vunpack.c.l.b16 %v498
        %v507 = vunpack.c.l.b16 %v499
        %v508 = vunpack.c.l.b16 %v500
        %v509 = vpack.c.b16 %v506, %v505
        %v510 = vpack.c.b16 %v508, %v507
        %513 = vmatprep.subr.bf16.mxu0 0
        %514 = vmatpush1.bf16.msra.mxu0 %v509
        %515 = vmatprep.subr.bf16.mxu0 0
        %516 = vmatpush1.bf16.msra.mxu0 %v510
        %517 = vmatprep.subr.bf16.mxu0 0
        %518 = vmatpush1.bf16.msra.mxu0 0
        %519 = vmatprep.subr.bf16.mxu0 0
        %520 = vmatpush1.bf16.msra.mxu0 0
        %521 = vmatprep.subr.bf16.mxu0 0
        %522 = vmatpush1.bf16.msra.mxu0 0
        %523 = vmatprep.subr.bf16.mxu0 0
        %524 = vmatpush1.bf16.msra.mxu0 0
        %525 = vmatprep.subr.bf16.mxu0 0
        %526 = vmatpush1.bf16.msra.mxu0 0
        %527 = vmatprep.subr.bf16.mxu0 0
        %528 = vmatpush1.bf16.msra.mxu0 0
        %529 = vmatprep.subr.bf16.mxu0 0
        %530 = vmatpush1.bf16.msra.mxu0 0
        %531 = vmatprep.subr.bf16.mxu0 0
        %532 = vmatpush1.bf16.msra.mxu0 0
        %533 = vmatprep.subr.bf16.mxu0 0
        %534 = vmatpush1.bf16.msra.mxu0 0
        %535 = vmatprep.subr.bf16.mxu0 0
        %536 = vmatpush1.bf16.msra.mxu0 0
        %537 = vmatprep.subr.bf16.mxu0 0
        %538 = vmatpush1.bf16.msra.mxu0 0
        %539 = vmatprep.subr.bf16.mxu0 0
        %540 = vmatpush1.bf16.msra.mxu0 0
        %541 = vmatprep.subr.bf16.mxu0 0
        %542 = vmatpush1.bf16.msra.mxu0 0
        %543 = vmatprep.subr.bf16.mxu0 0
        %544 = vmatpush1.bf16.msra.mxu0 0
        %545 = vmatprep.mubr.bf16.mxu0 0
        %546 = vmatmul.mubr.bf16.gmra.mrb[0].mxu0 %v336
        %v547 = vpop.f32.mrb[0].mxu0
        %v548 = vadd.f32 0.0, %v547
        %v549 = vpop.f32.mrb[0].mxu0
        %v550 = vpop.f32.mrb[0].mxu0
        %v551 = vpop.f32.mrb[0].mxu0
        %552 = vdwg.mxu0
        %v553 = vpack.c.bf16 %v491, %v491
        %s554 = scalar_lea.vmem %s270, 4 [#allocation2]
        %555 = vst.msk [vmem:[%s554] sm:$0xf] %vm435, %v553
        %v556 = vpack.c.bf16 %v548, %v548
        %s557 = scalar_lea.vmem %s277, 4 [#allocation4]
        %558 = vst.msk [vmem:[%s557] sm:$0xf] %vm435, %v556
        %s559 = scalar_lea.vmem %s3, 32
        %v560 = vld [vmem:[%s559] sm:$0xf]
        %v561 = vld [vmem:[%s559 + $0x4] sm:$0xf]
        %v562 = vld [vmem:[%s559 + $0x8] sm:$0xf]
        %v563 = vld [vmem:[%s559 + $0xc] sm:$0xf]
        %v568 = vunpack.c.l.b16 %v560
        %v569 = vunpack.c.l.b16 %v561
        %v570 = vunpack.c.l.b16 %v562
        %v571 = vunpack.c.l.b16 %v563
        %v572 = vpack.c.b16 %v569, %v568
        %v573 = vpack.c.b16 %v571, %v570
        %576 = vmatprep.subr.bf16.mxu0 0
        %577 = vmatpush1.bf16.msra.mxu0 %v572
        %578 = vmatprep.subr.bf16.mxu0 0
        %579 = vmatpush1.bf16.msra.mxu0 %v573
        %580 = vmatprep.subr.bf16.mxu0 0
        %581 = vmatpush1.bf16.msra.mxu0 0
        %582 = vmatprep.subr.bf16.mxu0 0
        %583 = vmatpush1.bf16.msra.mxu0 0
        %584 = vmatprep.subr.bf16.mxu0 0
        %585 = vmatpush1.bf16.msra.mxu0 0
        %586 = vmatprep.subr.bf16.mxu0 0
        %587 = vmatpush1.bf16.msra.mxu0 0
        %588 = vmatprep.subr.bf16.mxu0 0
        %589 = vmatpush1.bf16.msra.mxu0 0
        %590 = vmatprep.subr.bf16.mxu0 0
        %591 = vmatpush1.bf16.msra.mxu0 0
        %592 = vmatprep.subr.bf16.mxu0 0
        %593 = vmatpush1.bf16.msra.mxu0 0
        %594 = vmatprep.subr.bf16.mxu0 0
        %595 = vmatpush1.bf16.msra.mxu0 0
        %596 = vmatprep.subr.bf16.mxu0 0
        %597 = vmatpush1.bf16.msra.mxu0 0
        %598 = vmatprep.subr.bf16.mxu0 0
        %599 = vmatpush1.bf16.msra.mxu0 0
        %600 = vmatprep.subr.bf16.mxu0 0
        %601 = vmatpush1.bf16.msra.mxu0 0
        %602 = vmatprep.subr.bf16.mxu0 0
        %603 = vmatpush1.bf16.msra.mxu0 0
        %604 = vmatprep.subr.bf16.mxu0 0
        %605 = vmatpush1.bf16.msra.mxu0 0
        %606 = vmatprep.subr.bf16.mxu0 0
        %607 = vmatpush1.bf16.msra.mxu0 0
        %608 = vmatprep.mubr.bf16.mxu0 0
        %609 = vmatmul.mubr.bf16.gmra.mrb[0].mxu0 %v336
        %v610 = vpop.f32.mrb[0].mxu0
        %v611 = vadd.f32 0.0, %v610
        %v612 = vpop.f32.mrb[0].mxu0
        %v613 = vpop.f32.mrb[0].mxu0
        %v614 = vpop.f32.mrb[0].mxu0
        %615 = vdwg.mxu0
        %s616 = scalar_lea.vmem %s4, 32
        %v617 = vld [vmem:[%s616] sm:$0xf]
        %v618 = vld [vmem:[%s616 + $0x4] sm:$0xf]
        %v619 = vld [vmem:[%s616 + $0x8] sm:$0xf]
        %v620 = vld [vmem:[%s616 + $0xc] sm:$0xf]
        %v625 = vunpack.c.l.b16 %v617
        %v626 = vunpack.c.l.b16 %v618
        %v627 = vunpack.c.l.b16 %v619
        %v628 = vunpack.c.l.b16 %v620
        %v629 = vpack.c.b16 %v626, %v625
        %v630 = vpack.c.b16 %v628, %v627
        %633 = vmatprep.subr.bf16.mxu0 0
        %634 = vmatpush1.bf16.msra.mxu0 %v629
        %635 = vmatprep.subr.bf16.mxu0 0
        %636 = vmatpush1.bf16.msra.mxu0 %v630
        %637 = vmatprep.subr.bf16.mxu0 0
        %638 = vmatpush1.bf16.msra.mxu0 0
        %639 = vmatprep.subr.bf16.mxu0 0
        %640 = vmatpush1.bf16.msra.mxu0 0
        %641 = vmatprep.subr.bf16.mxu0 0
        %642 = vmatpush1.bf16.msra.mxu0 0
        %643 = vmatprep.subr.bf16.mxu0 0
        %644 = vmatpush1.bf16.msra.mxu0 0
        %645 = vmatprep.subr.bf16.mxu0 0
        %646 = vmatpush1.bf16.msra.mxu0 0
        %647 = vmatprep.subr.bf16.mxu0 0
        %648 = vmatpush1.bf16.msra.mxu0 0
        %649 = vmatprep.subr.bf16.mxu0 0
        %650 = vmatpush1.bf16.msra.mxu0 0
        %651 = vmatprep.subr.bf16.mxu0 0
        %652 = vmatpush1.bf16.msra.mxu0 0
        %653 = vmatprep.subr.bf16.mxu0 0
        %654 = vmatpush1.bf16.msra.mxu0 0
        %655 = vmatprep.subr.bf16.mxu0 0
        %656 = vmatpush1.bf16.msra.mxu0 0
        %657 = vmatprep.subr.bf16.mxu0 0
        %658 = vmatpush1.bf16.msra.mxu0 0
        %659 = vmatprep.subr.bf16.mxu0 0
        %660 = vmatpush1.bf16.msra.mxu0 0
        %661 = vmatprep.subr.bf16.mxu0 0
        %662 = vmatpush1.bf16.msra.mxu0 0
        %663 = vmatprep.subr.bf16.mxu0 0
        %664 = vmatpush1.bf16.msra.mxu0 0
        %665 = vmatprep.mubr.bf16.mxu0 0
        %666 = vmatmul.mubr.bf16.gmra.mrb[0].mxu0 %v336
        %v667 = vpop.f32.mrb[0].mxu0
        %v668 = vadd.f32 0.0, %v667
        %v669 = vpop.f32.mrb[0].mxu0
        %v670 = vpop.f32.mrb[0].mxu0
        %v671 = vpop.f32.mrb[0].mxu0
        %672 = vdwg.mxu0
        %v673 = vpack.c.bf16 %v611, %v611
        %s674 = scalar_lea.vmem %s270, 8 [#allocation2]
        %675 = vst.msk [vmem:[%s674] sm:$0xf] %vm435, %v673
        %v676 = vpack.c.bf16 %v668, %v668
        %s677 = scalar_lea.vmem %s277, 8 [#allocation4]
        %678 = vst.msk [vmem:[%s677] sm:$0xf] %vm435, %v676
        %s679 = scalar_lea.vmem %s3, 48
        %v680 = vld [vmem:[%s679] sm:$0xf]
        %v681 = vld [vmem:[%s679 + $0x4] sm:$0xf]
        %v682 = vld [vmem:[%s679 + $0x8] sm:$0xf]
        %v683 = vld [vmem:[%s679 + $0xc] sm:$0xf]
        %v688 = vunpack.c.l.b16 %v680
        %v689 = vunpack.c.l.b16 %v681
        %v690 = vunpack.c.l.b16 %v682
        %v691 = vunpack.c.l.b16 %v683
        %v692 = vpack.c.b16 %v689, %v688
        %v693 = vpack.c.b16 %v691, %v690
        %696 = vmatprep.subr.bf16.mxu0 0
        %697 = vmatpush1.bf16.msra.mxu0 %v692
        %698 = vmatprep.subr.bf16.mxu0 0
        %699 = vmatpush1.bf16.msra.mxu0 %v693
        %700 = vmatprep.subr.bf16.mxu0 0
        %701 = vmatpush1.bf16.msra.mxu0 0
        %702 = vmatprep.subr.bf16.mxu0 0
        %703 = vmatpush1.bf16.msra.mxu0 0
        %704 = vmatprep.subr.bf16.mxu0 0
        %705 = vmatpush1.bf16.msra.mxu0 0
        %706 = vmatprep.subr.bf16.mxu0 0
        %707 = vmatpush1.bf16.msra.mxu0 0
        %708 = vmatprep.subr.bf16.mxu0 0
        %709 = vmatpush1.bf16.msra.mxu0 0
        %710 = vmatprep.subr.bf16.mxu0 0
        %711 = vmatpush1.bf16.msra.mxu0 0
        %712 = vmatprep.subr.bf16.mxu0 0
        %713 = vmatpush1.bf16.msra.mxu0 0
        %714 = vmatprep.subr.bf16.mxu0 0
        %715 = vmatpush1.bf16.msra.mxu0 0
        %716 = vmatprep.subr.bf16.mxu0 0
        %717 = vmatpush1.bf16.msra.mxu0 0
        %718 = vmatprep.subr.bf16.mxu0 0
        %719 = vmatpush1.bf16.msra.mxu0 0
        %720 = vmatprep.subr.bf16.mxu0 0
        %721 = vmatpush1.bf16.msra.mxu0 0
        %722 = vmatprep.subr.bf16.mxu0 0
        %723 = vmatpush1.bf16.msra.mxu0 0
        %724 = vmatprep.subr.bf16.mxu0 0
        %725 = vmatpush1.bf16.msra.mxu0 0
        %726 = vmatprep.subr.bf16.mxu0 0
        %727 = vmatpush1.bf16.msra.mxu0 0
        %728 = vmatprep.mubr.bf16.mxu0 0
        %729 = vmatmul.mubr.bf16.gmra.mrb[0].mxu0 %v336
        %v730 = vpop.f32.mrb[0].mxu0
        %v731 = vadd.f32 0.0, %v730
        %v732 = vpop.f32.mrb[0].mxu0
        %v733 = vpop.f32.mrb[0].mxu0
        %v734 = vpop.f32.mrb[0].mxu0
        %735 = vdwg.mxu0
        %s736 = scalar_lea.vmem %s4, 48
        %v737 = vld [vmem:[%s736] sm:$0xf]
        %v738 = vld [vmem:[%s736 + $0x4] sm:$0xf]
        %v739 = vld [vmem:[%s736 + $0x8] sm:$0xf]
        %v740 = vld [vmem:[%s736 + $0xc] sm:$0xf]
        %v745 = vunpack.c.l.b16 %v737
        %v746 = vunpack.c.l.b16 %v738
        %v747 = vunpack.c.l.b16 %v739
        %v748 = vunpack.c.l.b16 %v740
        %v749 = vpack.c.b16 %v746, %v745
        %v750 = vpack.c.b16 %v748, %v747
        %753 = vmatprep.subr.bf16.mxu0 0
        %754 = vmatpush1.bf16.msra.mxu0 %v749
        %755 = vmatprep.subr.bf16.mxu0 0
        %756 = vmatpush1.bf16.msra.mxu0 %v750
        %757 = vmatprep.subr.bf16.mxu0 0
        %758 = vmatpush1.bf16.msra.mxu0 0
        %759 = vmatprep.subr.bf16.mxu0 0
        %760 = vmatpush1.bf16.msra.mxu0 0
        %761 = vmatprep.subr.bf16.mxu0 0
        %762 = vmatpush1.bf16.msra.mxu0 0
        %763 = vmatprep.subr.bf16.mxu0 0
        %764 = vmatpush1.bf16.msra.mxu0 0
        %765 = vmatprep.subr.bf16.mxu0 0
        %766 = vmatpush1.bf16.msra.mxu0 0
        %767 = vmatprep.subr.bf16.mxu0 0
        %768 = vmatpush1.bf16.msra.mxu0 0
        %769 = vmatprep.subr.bf16.mxu0 0
        %770 = vmatpush1.bf16.msra.mxu0 0
        %771 = vmatprep.subr.bf16.mxu0 0
        %772 = vmatpush1.bf16.msra.mxu0 0
        %773 = vmatprep.subr.bf16.mxu0 0
        %774 = vmatpush1.bf16.msra.mxu0 0
        %775 = vmatprep.subr.bf16.mxu0 0
        %776 = vmatpush1.bf16.msra.mxu0 0
        %777 = vmatprep.subr.bf16.mxu0 0
        %778 = vmatpush1.bf16.msra.mxu0 0
        %779 = vmatprep.subr.bf16.mxu0 0
        %780 = vmatpush1.bf16.msra.mxu0 0
        %781 = vmatprep.subr.bf16.mxu0 0
        %782 = vmatpush1.bf16.msra.mxu0 0
        %783 = vmatprep.subr.bf16.mxu0 0
        %784 = vmatpush1.bf16.msra.mxu0 0
        %785 = vmatprep.mubr.bf16.mxu0 0
        %786 = vmatmul.mubr.bf16.gmra.mrb[0].mxu0 %v336
        %v787 = vpop.f32.mrb[0].mxu0
        %v788 = vadd.f32 0.0, %v787
        %v789 = vpop.f32.mrb[0].mxu0
        %v790 = vpop.f32.mrb[0].mxu0
        %v791 = vpop.f32.mrb[0].mxu0
        %792 = vdwg.mxu0
        %v793 = vpack.c.bf16 %v731, %v731
        %s794 = scalar_lea.vmem %s270, 12 [#allocation2]
        %795 = vst.msk [vmem:[%s794] sm:$0xf] %vm435, %v793
        %v796 = vpack.c.bf16 %v788, %v788
        %s797 = scalar_lea.vmem %s277, 12 [#allocation4]
        %798 = vst.msk [vmem:[%s797] sm:$0xf] %vm435, %v796
        %s799 = sand.u32 %s158, 1
        %s800 = scalar_lea.sflag [#allocation3], %s799
        %s801 = sand.u32 %s158, 1
        %s802 = smul.addr %s801, 16
        %s803 = scalar_lea.vmem [#allocation2], %s802
        %s804 = sand.u32 %s186, 1
        %s805 = scalar_lea.sflag [#allocation5], %s804
        %s806 = sand.u32 %s186, 1
        %s807 = smul.addr %s806, 16
        %s808 = scalar_lea.vmem [#allocation4], %s807
        // Predicated region
        $region41: #{tpu_custom_call.1} parent=39 // pred_check
          %p809 = pneg %p168
        $region42: #{tpu_custom_call.1} parent=39 // pred_check_branch
          %811 = sbr.rel (%p809) target = $region44
        $region43: #{tpu_custom_call.1} parent=39 // pred_region
          %s813 = ssub.s32 256, 256
          %814 = vsyncadd %s800, %s813
          %s815 = smul.addr %s28, 4
          %s816 = sadd.s32 %s29, %s815
          %s817 = smul.addr %s816, 64
          %s818 = scalar_lea.hbm %s5, %s817
          %s819 = sshll.u32 %s803, 4
          %s820 = int_to_ptr.vmem [resolvable:$true] %s819
          %825 = dma.vmem_to_hbm [thread:$0]  %s820, 256, %s818, %s800, 64, 64, 4
        $region44: #{tpu_custom_call.1} parent=39 // pred_fallthru
          _
        // Predicated region
        $region45: #{tpu_custom_call.1} parent=39 // pred_check
          %p826 = pneg %p196
        $region46: #{tpu_custom_call.1} parent=39 // pred_check_branch
          %828 = sbr.rel (%p826) target = $region48
        $region47: #{tpu_custom_call.1} parent=39 // pred_region
          %s830 = ssub.s32 256, 256
          %831 = vsyncadd %s805, %s830
          %s832 = smul.addr %s28, 4
          %s833 = sadd.s32 %s29, %s832
          %s834 = smul.addr %s833, 64
          %s835 = scalar_lea.hbm %s6, %s834
          %s836 = sshll.u32 %s808, 4
          %s837 = int_to_ptr.vmem [resolvable:$true] %s836
          %842 = dma.vmem_to_hbm [thread:$0]  %s837, 256, %s835, %s805, 64, 64, 4
        $region48: #{tpu_custom_call.1} parent=39 // pred_fallthru
          _
      $region40: #{tpu_custom_call.1} parent=5 // pred_fallthru
        _
      %p843 = scmp.le.s32.totalorder 2, %s19
      // Predicated region
      $region49: #{tpu_custom_call.1} parent=5 // pred_check
        %p844 = pneg %p843
      $region50: #{tpu_custom_call.1} parent=5 // pred_check_branch
        %846 = sbr.rel (%p844) target = $region52
      $region51: #{tpu_custom_call.1} parent=5 // pred_region
        %s847 = ssub.s32 %s19, 2
        // Predicated region
        $region53: #{tpu_custom_call.1} parent=51 // pred_check
          %p848 = pneg %p174
        $region54: #{tpu_custom_call.1} parent=51 // pred_check_branch
          %850 = sbr.rel (%p848) target = $region56
        $region55: #{tpu_custom_call.1} parent=51 // pred_region
          %s851 = sand.u32 %s159, 1
          %s852 = scalar_lea.sflag [#allocation3], %s851
          %s853 = sand.u32 %s159, 1
          %s854 = smul.addr %s853, 16
          %s855 = scalar_lea.vmem [#allocation2], %s854
          %856 = dma.done %s852, 256
        $region56: #{tpu_custom_call.1} parent=51 // pred_fallthru
          _
        // Predicated region
        $region57: #{tpu_custom_call.1} parent=51 // pred_check
          %p857 = pneg %p202
        $region58: #{tpu_custom_call.1} parent=51 // pred_check_branch
          %859 = sbr.rel (%p857) target = $region60
        $region59: #{tpu_custom_call.1} parent=51 // pred_region
          %s860 = sand.u32 %s187, 1
          %s861 = scalar_lea.sflag [#allocation5], %s860
          %s862 = sand.u32 %s187, 1
          %s863 = smul.addr %s862, 16
          %s864 = scalar_lea.vmem [#allocation4], %s863
          %865 = dma.done %s861, 256
        $region60: #{tpu_custom_call.1} parent=51 // pred_fallthru
          _
      $region52: #{tpu_custom_call.1} parent=5 // pred_fallthru
        _
    $region6: #{tpu_custom_call.1} parent=1 // loop_footer
      %s23 = sadd.s32 1, %s19
    $region7: #{tpu_custom_call.1} parent=1 // loop_footer_branch
      %18 = sbr.rel target = $region3
    $region8: #{tpu_custom_call.1} parent=1 // loop_exit
      _
    %866 = vsyncpa [#allocation3], 1
    %s867 = scalar_lea.sflag [#allocation3], 1
    %868 = vsyncpa %s867, 1
    %869 = vsyncpa [#allocation5], 1
    %s870 = scalar_lea.sflag [#allocation5], 1
    %871 = vsyncpa %s870, 1

</llo_original>
